<compile_context>
chip_gen: v6e
topology: v6e:2x2x1
jax: 0.10.0
libtpu: 0.0.40
codegen_flags: <defaults>
</compile_context>

<pallas_src>
import jax
import jax.numpy as jnp
from jax import lax
from jax.experimental import pallas as pl
from jax.experimental.pallas import tpu as pltpu


def _round_up(v, m):
    return (v + m - 1) // m * m


def _pick_tile(size, base, max_tile):
    """Pick a tile (multiple of `base`, <= max_tile) and the padded size.

    Prefers the largest tile that divides the base-rounded size exactly
    (zero extra padding); falls back to max_tile with <=25% extra padding
    when the exact divisor would be tiny (keeps MXU tiles usefully large).
    """
    padded = _round_up(size, base)
    q = padded // base
    qmax = max(1, max_tile // base)
    d = max(dd for dd in range(1, min(q, qmax) + 1) if q % dd == 0)
    tile_exact = d * base
    tile_big = qmax * base
    padded_big = _round_up(size, tile_big)
    if tile_exact * 4 < tile_big and (padded_big - padded) * 4 <= padded:
        return tile_big, padded_big
    return tile_exact, padded


def _sp(w_ref, dtype):
    # softplus == logaddexp(0, w): numerically stable, matches torch Softplus
    # (beta=1) to float tolerance.  Math in f32, result in the MXU operand
    # dtype so bf16 inputs run at full bf16 MXU rate.
    return jnp.logaddexp(0.0, w_ref[...].astype(jnp.float32)).astype(dtype)


# --------------------- fused kernels (softplus + matmul) ---------------------
# Weight blocks come straight from the original (out_features, in_features)
# layout; the transposed contraction (rhs contracting on its last dim) feeds
# the MXU directly — no wrapper-side weight.T copy.

def _fused_kernel_f32(x_ref, w_ref, o_ref):
    # float32 output: accumulate directly into o_ref (resident across K axis);
    # no scratch accumulator, no finalize copy/cast.
    kk = pl.program_id(2)

    @pl.when(kk == 0)
    def _init():
        o_ref[...] = jnp.zeros_like(o_ref)

    o_ref[...] += lax.dot_general(
        x_ref[...], _sp(w_ref, x_ref.dtype),
        dimension_numbers=(((1,), (1,)), ((), ())),
        preferred_element_type=jnp.float32)


def _fused_kernel_acc(x_ref, w_ref, o_ref, acc_ref):
    # Narrow output dtype: f32 VMEM accumulator, cast on the last K step.
    kk = pl.program_id(2)

    @pl.when(kk == 0)
    def _init():
        acc_ref[...] = jnp.zeros_like(acc_ref)

    acc_ref[...] += lax.dot_general(
        x_ref[...], _sp(w_ref, x_ref.dtype),
        dimension_numbers=(((1,), (1,)), ((), ())),
        preferred_element_type=jnp.float32)

    @pl.when(kk == pl.num_programs(2) - 1)
    def _finalize():
        o_ref[...] = acc_ref[...].astype(o_ref.dtype)


# ---------------- resident-stripe kernel (multi-M-tile batches) --------------
# Grid is (N tiles, M tiles) with M innermost ("arbitrary", never sharded):
# each (tn, K) weight stripe is DMA'd once, softplus'd once into a VMEM
# scratch at i == 0, and reused for every M tile — the EUP cost is paid
# exactly once per weight element and the weight is read from HBM once.

def _resident_kernel(x_ref, w_ref, o_ref, sp_ref):
    i = pl.program_id(1)

    @pl.when(i == 0)
    def _softplus_once():
        sp_ref[...] = _sp(w_ref, sp_ref.dtype)

    o_ref[...] = lax.dot_general(
        x_ref[...], sp_ref[...],
        dimension_numbers=(((1,), (1,)), ((), ())),
        preferred_element_type=jnp.float32).astype(o_ref.dtype)


# --------------------------------- wrapper -----------------------------------

def positive_linear(x, weight, *, tm=256, tn=512, tk=1024):
    """y = x @ softplus(weight)^T   (PositiveLinear.forward, no bias).

    x:      (batch, in_features)
    weight: (out_features, in_features) -- same layout as the torch Parameter.
    """
    m, k = x.shape
    n, k2 = weight.shape
    assert k == k2, "in_features mismatch"
    out_dtype = x.dtype
    xsz = jnp.dtype(x.dtype).itemsize
    wsz = jnp.dtype(weight.dtype).itemsize
    osz = jnp.dtype(out_dtype).itemsize

    # Sublane packing multiple for the M dim: 8 (f32) / 16 (bf16) / 32 (i8).
    sub_m = 8 * max(1, 4 // xsz)

    tm_e, mp = _pick_tile(m, sub_m, max(sub_m, tm))
    tn_e, np_ = _pick_tile(n, 128, max(128, tn))
    nm, nn = mp // tm_e, np_ // tn_e

    # v7x has 2 TensorCores: make sure the parallel grid has >= 2 tiles when
    # N is large enough to split (otherwise half the chip's MXU idles).
    if nm * nn < 2 and np_ >= 256:
        tn_e, np_ = _pick_tile(n, 128, max(128, np_ // 2))
        nn = np_ // tn_e

    kp = _round_up(k, 128)

    # Kernel selection:
    #  * nm == 1 (typical ICNN small-batch / GEMV regime): fused kernel,
    #    softplus computed exactly once per weight element, in-kernel.
    #  * nm > 1 and a full-K weight stripe fits VMEM: resident kernel,
    #    softplus computed once per stripe and reused across all M tiles.
    #  * otherwise: fused kernel (softplus recomputed per M tile).
    resident_need = (2 * tm_e * kp * xsz        # x tiles (double-buffered)
                     + 2 * tn_e * kp * wsz      # weight stripe
                     + tn_e * kp * xsz          # softplus scratch
                     + 2 * tm_e * tn_e * osz)   # output tiles
    use_resident = nm > 1 and resident_need <= 24 * 1024 * 1024
    # TODO(synk): for nm > 1 with weights too large for a VMEM-resident K
    # stripe, add a K-stripe-cached / pre-pass variant so softplus is not
    # recomputed per M tile on the fallback path.

    if not use_resident:
        tk_e, kp = _pick_tile(k, 128, max(128, tk))
        nk = kp // tk_e

    # Zero-pad to tile multiples. Padded K columns of x are zero, so the
    # softplus(0) = ln(2) of padded weight columns contributes nothing;
    # padded M rows / N columns are sliced off the output.
    if (mp, kp) != (m, k):
        x = jnp.pad(x, ((0, mp - m), (0, kp - k)))
    if (np_, kp) != (n, k):
        weight = jnp.pad(weight, ((0, np_ - n), (0, kp - k)))

    flops = 2 * mp * np_ * kp

    if use_resident:
        need = resident_need
        grid = (nn, nm)
        in_specs = [
            pl.BlockSpec((tm_e, kp), lambda j, i: (i, 0)),
            pl.BlockSpec((tn_e, kp), lambda j, i: (j, 0)),
        ]
        out_specs = pl.BlockSpec((tm_e, tn_e), lambda j, i: (i, j))
        scratch = [pltpu.VMEM((tn_e, kp), x.dtype)]
        dims = ("parallel", "arbitrary")
        kernel = _resident_kernel
        cost = pl.CostEstimate(
            flops=flops, transcendentals=2 * np_ * kp,
            bytes_accessed=nn * mp * kp * xsz + np_ * kp * wsz
            + mp * np_ * osz)
    else:
        acc_direct = jnp.dtype(out_dtype) == jnp.dtype(jnp.float32)
        need = (2 * (tm_e * tk_e * xsz + tn_e * tk_e * wsz)
                + 2 * tm_e * tn_e * osz
                + (0 if acc_direct else tm_e * tn_e * 4))
        grid = (nm, nn, nk)
        in_specs = [
            pl.BlockSpec((tm_e, tk_e), lambda i, j, kk: (i, kk)),
            pl.BlockSpec((tn_e, tk_e), lambda i, j, kk: (j, kk)),
        ]
        out_specs = pl.BlockSpec((tm_e, tn_e), lambda i, j, kk: (i, j))
        scratch = [] if acc_direct else [pltpu.VMEM((tm_e, tn_e), jnp.float32)]
        dims = ("parallel", "parallel", "arbitrary")
        kernel = _fused_kernel_f32 if acc_direct else _fused_kernel_acc
        cost = pl.CostEstimate(
            flops=flops, transcendentals=2 * nm * np_ * kp,
            bytes_accessed=nn * mp * kp * xsz + nm * np_ * kp * wsz
            + mp * np_ * osz)

    # Only request extra scoped VMEM when the tiles actually need it; cap from
    # the hardware so we leave headroom on v7x's 64 MiB per-core VMEM.
    vmem_limit = None
    padded_need = int(need * 1.25) + (2 << 20)
    if padded_need > (14 << 20):
        try:
            cap = (3 * pltpu.get_tpu_info().vmem_capacity_bytes) // 4
        except Exception:
            cap = 48 << 20
        vmem_limit = int(min(padded_need, cap))

    out = pl.pallas_call(
        kernel,
        out_shape=jax.ShapeDtypeStruct((mp, np_), out_dtype),
        grid=grid,
        in_specs=in_specs,
        out_specs=out_specs,
        scratch_shapes=scratch,
        compiler_params=pltpu.CompilerParams(
            dimension_semantics=dims, vmem_limit_bytes=vmem_limit),
        cost_estimate=cost,
    )(x, weight)

    if (mp, np_) != (m, n):
        out = out[:m, :n]
    return out


def positive_linear_ref(x, weight):
    # Pure-JAX reference (f32) for correctness checks.
    return (x.astype(jnp.float32)
            @ jax.nn.softplus(weight.astype(jnp.float32)).T)


if __name__ == "__main__":
    key = jax.random.PRNGKey(0)
    k1, k2, k3, k4, k5, k6 = jax.random.split(key, 6)

    # Case 1: small ICNN layer, f32, single tile everywhere -> fused path
    # with direct f32 accumulation into o_ref (no scratch accumulator).
    b, din, dout = 8, 32, 32
    x = jax.random.normal(k1, (b, din), dtype=jnp.float32)
    w = (1.0 / din) * jax.random.normal(k2, (dout, din), dtype=jnp.float32)
    y = jax.block_until_ready(positive_linear(x, w))
    y_ref = positive_linear_ref(x, w)
    assert y.shape == (b, dout)
    assert jnp.allclose(y, y_ref, atol=1e-5, rtol=1e-5), "case 1 mismatch"

    # Case 2: multiple M / N tiles with K and N padding -> resident-stripe
    # path (softplus computed once per weight element, weight read once).
    b2, din2, dout2 = 48, 160, 320
    x2 = jax.random.normal(k3, (b2, din2), dtype=jnp.float32)
    w2 = (1.0 / din2) * jax.random.normal(k4, (dout2, din2), dtype=jnp.float32)
    y2 = jax.block_until_ready(positive_linear(x2, w2, tm=16, tn=128))
    y2_ref = positive_linear_ref(x2, w2)
    assert y2.shape == (b2, dout2)
    assert jnp.allclose(y2, y2_ref, atol=1e-4, rtol=1e-4), "case 2 mismatch"

    # Case 3: bf16 inputs with batch not a multiple of 16 -> M rounded to the
    # bf16 (16, 128) packing; fused path with f32 VMEM accumulator.
    b3, din3, dout3 = 12, 64, 64
    x3 = jax.random.normal(k5, (b3, din3), dtype=jnp.float32).astype(jnp.bfloat16)
    w3 = ((1.0 / din3)
          * jax.random.normal(k6, (dout3, din3), dtype=jnp.float32)
          ).astype(jnp.bfloat16)
    y3 = jax.block_until_ready(positive_linear(x3, w3))
    y3_ref = positive_linear_ref(x3, w3)
    assert y3.shape == (b3, dout3)
    assert jnp.allclose(y3.astype(jnp.float32), y3_ref, atol=0.1, rtol=0.05), \
        "case 3 mismatch"

    print("KERNEL_OK")
</pallas_src>

<mosaic_0001>
module attributes {stable_mosaic.version = 11 : i64} {
  func.func @_fused_kernel_f32(%arg0: i32, %arg1: i32, %arg2: i32, %arg3: memref<8x128xf32, #tpu.memory_space<vmem>>, %arg4: memref<128x128xf32, #tpu.memory_space<vmem>>, %arg5: memref<8x128xf32, #tpu.memory_space<vmem>>) attributes {dimension_semantics = [#tpu.dimension_semantics<parallel>, #tpu.dimension_semantics<parallel>, #tpu.dimension_semantics<arbitrary>], iteration_bounds = array<i64: 1, 1, 1>, scalar_prefetch = 0 : i64, scratch_operands = 0 : i64, tpu.core_type = #tpu.core_type<tc>, window_params = [{transform_indices = @transform_0, window_bounds = array<i64: 8, 128>}, {transform_indices = @transform_1, window_bounds = array<i64: 128, 128>}, {transform_indices = @transform_2, window_bounds = array<i64: 8, 128>}]} {
    %c0_i32 = arith.constant 0 : i32
    %0 = arith.cmpi eq, %arg2, %c0_i32 : i32
    %1 = arith.extui %0 : i1 to i32
    %c0_i32_0 = arith.constant 0 : i32
    %2 = arith.cmpi ne, %1, %c0_i32_0 : i32
    scf.if %2 {
      %cst_10 = arith.constant 0.000000e+00 : f32
      %23 = vector.broadcast %cst_10 : f32 to vector<8x128xf32>
      %c0_11 = arith.constant 0 : index
      %c0_12 = arith.constant 0 : index
      %24 = vector.load %arg5[%c0_11, %c0_12] : memref<8x128xf32, #tpu.memory_space<vmem>>, vector<8x128xf32>
      tpu.vector_store %arg5[%c0_11, %c0_12], %23 {strides = array<i32>} : memref<8x128xf32, #tpu.memory_space<vmem>>, vector<8x128xf32>,
    } else {
    }
    %c0 = arith.constant 0 : index
    %c0_1 = arith.constant 0 : index
    %3 = vector.load %arg5[%c0, %c0_1] : memref<8x128xf32, #tpu.memory_space<vmem>>, vector<8x128xf32>
    %c0_2 = arith.constant 0 : index
    %c0_3 = arith.constant 0 : index
    %4 = vector.load %arg3[%c0_2, %c0_3] : memref<8x128xf32, #tpu.memory_space<vmem>>, vector<8x128xf32>
    %c0_4 = arith.constant 0 : index
    %c0_5 = arith.constant 0 : index
    %5 = vector.load %arg4[%c0_4, %c0_5] : memref<128x128xf32, #tpu.memory_space<vmem>>, vector<128x128xf32>
    %cst = arith.constant 0.000000e+00 : f32
    %6 = vector.broadcast %cst : f32 to vector<128x128xf32>
    %7 = arith.maximumf %6, %5 : vector<128x128xf32>
    %8 = vector.broadcast %cst : f32 to vector<128x128xf32>
    %9 = arith.subf %8, %5 : vector<128x128xf32>
    %10 = arith.cmpf one, %9, %9 : vector<128x128xf32>
    %11 = vector.broadcast %cst : f32 to vector<128x128xf32>
    %12 = arith.addf %11, %5 : vector<128x128xf32>
    %13 = math.absf %9 : vector<128x128xf32>
    %cst_6 = arith.constant 0.000000e+00 : f32
    %14 = vector.broadcast %cst_6 : f32 to vector<128x128xf32>
    %15 = arith.subf %14, %13 : vector<128x128xf32>
    %16 = math.exp %15 : vector<128x128xf32>
    %17 = math.log1p %16 : vector<128x128xf32>
    %18 = arith.addf %7, %17 : vector<128x128xf32>
    %19 = arith.select %10, %12, %18 : vector<128x128xi1>, vector<128x128xf32>
    %cst_7 = arith.constant dense<0.000000e+00> : vector<8x128xf32>
    %20 = tpu.matmul %4, %19, %cst_7 {dimension_numbers = #tpu.dot_dimension_numbers<[1], [1], [0], [0], [0, 0, 1, 0], [], []>} : vector<8x128xf32>, vector<128x128xf32>, vector<8x128xf32> -> vector<8x128xf32>
    %21 = arith.addf %3, %20 : vector<8x128xf32>
    %c0_8 = arith.constant 0 : index
    %c0_9 = arith.constant 0 : index
    %22 = vector.load %arg5[%c0_8, %c0_9] : memref<8x128xf32, #tpu.memory_space<vmem>>, vector<8x128xf32>
    tpu.vector_store %arg5[%c0_8, %c0_9], %21 {strides = array<i32>} : memref<8x128xf32, #tpu.memory_space<vmem>>, vector<8x128xf32>,
    return
  }
  func.func @transform_0(%arg0: i32, %arg1: i32, %arg2: i32) -> (i32, i32) {
    %c0_i32 = arith.constant 0 : i32
    return %arg0, %arg2 : i32, i32
  }
  func.func @transform_1(%arg0: i32, %arg1: i32, %arg2: i32) -> (i32, i32) {
    %c0_i32 = arith.constant 0 : i32
    return %arg1, %arg2 : i32, i32
  }
  func.func @transform_2(%arg0: i32, %arg1: i32, %arg2: i32) -> (i32, i32) {
    %c0_i32 = arith.constant 0 : i32
    return %arg0, %arg1 : i32, i32
  }
}

</mosaic_0001>

<llo_original>
// kernel: tpu_custom_call.1
$region0: #{tpu_custom_call.1}
  #allocation0 [shape = 'u32[]', space=smem, size = 0x4, offset = 0x4, fixed_abs, tag = 'smem constant byte address 0x4 - core index']
  #allocation1 [shape = 'u32[144,128]{1,0:T(1,128)}', space=vmem, size = 0x12000, scoped, tag = 'internal scratch']
  %s0 = inlined_call_operand.hbm [shape: f32[8,128], index: 0, kind: input, shape index: {}]
  %s1 = inlined_call_operand.hbm [shape: f32[128,128], index: 1, kind: input, shape index: {}]
  %s2 = inlined_call_operand.hbm [shape: f32[8,128], index: 2, kind: output, shape index: {}]
  %s3 = sld [smem:[#allocation0]]
  $region30: #{tpu_custom_call.1} parent=0
    _
  %s5 = ssub.s32 1, %s3
  %s6 = scalar_select 0, %s5, %s3
  $region1: #{tpu_custom_call.1} parent=0
    #allocation2 [shape = 'u8[4096]{0}', space=vmem, size = 0x1000, scoped, tag = 'input window, operand 0, single buffered']
    #allocation3 [shape = 's32[1]{0}', space=sflag, size = 0x4, scoped, tag = 'scoped memory for tpu_custom_call.1']
    #allocation4 [shape = 's32[1]{0}', space=sflag, size = 0x4, scoped, tag = 'scoped memory for tpu_custom_call.1']
    #allocation5 [shape = 'u8[65536]{0}', space=vmem, size = 0x10000, scoped, tag = 'input window, operand 1, single buffered']
    #allocation6 [shape = 's32[1]{0}', space=sflag, size = 0x4, scoped, tag = 'scoped memory for tpu_custom_call.1']
    #allocation7 [shape = 'u8[4096]{0}', space=vmem, size = 0x1000, scoped, tag = 'output window, operand 0, single buffered']
    %7 = vsyncpa [#allocation3], 0
    %8 = vsyncpa [#allocation6], 0
    %9 = vsyncpa [#allocation4], 0
    // Predicated region
    $region2: #{tpu_custom_call.1} parent=1 // pred_check
      _
    $region3: #{tpu_custom_call.1} parent=1 // pred_check_branch
      %11 = sbr.rel (0) target = $region5
    $region4: #{tpu_custom_call.1} parent=1 // pred_region
      %s13 = ssub.s32 128, 128
      %14 = vsyncadd [#allocation3], %s13
      %s16 = sshll.u32 [#allocation2], 4
      %s17 = int_to_ptr.vmem [resolvable:$true] %s16
      %19 = dma.hbm_to_vmem [thread:$0]  %s0, 128, %s17, [#allocation3]
    $region5: #{tpu_custom_call.1} parent=1 // pred_fallthru
      _
    // Predicated region
    $region6: #{tpu_custom_call.1} parent=1 // pred_check
      _
    $region7: #{tpu_custom_call.1} parent=1 // pred_check_branch
      %21 = sbr.rel (0) target = $region9
    $region8: #{tpu_custom_call.1} parent=1 // pred_region
      %s23 = ssub.s32 2048, 2048
      %24 = vsyncadd [#allocation6], %s23
      %s25 = sshll.u32 [#allocation5], 4
      %s26 = int_to_ptr.vmem [resolvable:$true] %s25
      %31 = dma.hbm_to_vmem [thread:$0]  %s1, 2048, %s26, [#allocation6], 128, 128, 8
    $region9: #{tpu_custom_call.1} parent=1 // pred_fallthru
      _
    // Predicated region
    $region10: #{tpu_custom_call.1} parent=1 // pred_check
      _
    $region11: #{tpu_custom_call.1} parent=1 // pred_check_branch
      %33 = sbr.rel (0) target = $region13
    $region12: #{tpu_custom_call.1} parent=1 // pred_region
      %34 = dma.done [#allocation3], 128
    $region13: #{tpu_custom_call.1} parent=1 // pred_fallthru
      _
    // Predicated region
    $region14: #{tpu_custom_call.1} parent=1 // pred_check
      _
    $region15: #{tpu_custom_call.1} parent=1 // pred_check_branch
      %36 = sbr.rel (0) target = $region17
    $region16: #{tpu_custom_call.1} parent=1 // pred_region
      %37 = dma.done [#allocation6], 2048
    $region17: #{tpu_custom_call.1} parent=1 // pred_fallthru
      _
    %p38 = scmp.eq.s32.totalorder 0, 0
    // Predicated region
    $region18: #{tpu_custom_call.1} parent=1 // pred_check
      %p39 = pneg %p38
    $region19: #{tpu_custom_call.1} parent=1 // pred_check_branch
      %41 = sbr.rel (%p39) target = $region21
    $region20: #{tpu_custom_call.1} parent=1 // pred_region
      %42 = vst [vmem:[#allocation7] sm:$0xff] 0.0
    $region21: #{tpu_custom_call.1} parent=1 // pred_fallthru
      _
    %v43 = vld [vmem:[#allocation7] sm:$0xff]
    %v44 = vld [vmem:[#allocation2] sm:$0xff]
    %v45 = vld [vmem:[#allocation5] sm:$0xff]
    %v46 = vld [vmem:[#allocation5 + $0x8] sm:$0xff]
    %v47 = vld [vmem:[#allocation5 + $0x10] sm:$0xff]
    %v48 = vld [vmem:[#allocation5 + $0x18] sm:$0xff]
    %v49 = vld [vmem:[#allocation5 + $0x20] sm:$0xff]
    %v50 = vld [vmem:[#allocation5 + $0x28] sm:$0xff]
    %v51 = vld [vmem:[#allocation5 + $0x30] sm:$0xff]
    %v52 = vld [vmem:[#allocation5 + $0x38] sm:$0xff]
    %v53 = vld [vmem:[#allocation5 + $0x40] sm:$0xff]
    %v54 = vld [vmem:[#allocation5 + $0x48] sm:$0xff]
    %v55 = vld [vmem:[#allocation5 + $0x50] sm:$0xff]
    %v56 = vld [vmem:[#allocation5 + $0x58] sm:$0xff]
    %v57 = vld [vmem:[#allocation5 + $0x60] sm:$0xff]
    %v58 = vld [vmem:[#allocation5 + $0x68] sm:$0xff]
    %v59 = vld [vmem:[#allocation5 + $0x70] sm:$0xff]
    %v60 = vld [vmem:[#allocation5 + $0x78] sm:$0xff]
    %v61 = vmax.f32 %v45, 0.0
    %v62 = vmax.f32 %v46, 0.0
    %v63 = vmax.f32 %v47, 0.0
    %v64 = vmax.f32 %v48, 0.0
    %v65 = vmax.f32 %v49, 0.0
    %v66 = vmax.f32 %v50, 0.0
    %v67 = vmax.f32 %v51, 0.0
    %v68 = vmax.f32 %v52, 0.0
    %v69 = vmax.f32 %v53, 0.0
    %v70 = vmax.f32 %v54, 0.0
    %v71 = vmax.f32 %v55, 0.0
    %v72 = vmax.f32 %v56, 0.0
    %v73 = vmax.f32 %v57, 0.0
    %v74 = vmax.f32 %v58, 0.0
    %v75 = vmax.f32 %v59, 0.0
    %v76 = vmax.f32 %v60, 0.0
    %v77 = vsub.f32 0.0, %v45
    %v78 = vsub.f32 0.0, %v46
    %v79 = vsub.f32 0.0, %v47
    %v80 = vsub.f32 0.0, %v48
    %v81 = vsub.f32 0.0, %v49
    %v82 = vsub.f32 0.0, %v50
    %v83 = vsub.f32 0.0, %v51
    %v84 = vsub.f32 0.0, %v52
    %v85 = vsub.f32 0.0, %v53
    %v86 = vsub.f32 0.0, %v54
    %v87 = vsub.f32 0.0, %v55
    %v88 = vsub.f32 0.0, %v56
    %v89 = vsub.f32 0.0, %v57
    %v90 = vsub.f32 0.0, %v58
    %v91 = vsub.f32 0.0, %v59
    %v92 = vsub.f32 0.0, %v60
    %vm93 = vcmp.ne.f32.partialorder %v77, %v77
    %vm94 = vcmp.ne.f32.partialorder %v78, %v78
    %vm95 = vcmp.ne.f32.partialorder %v79, %v79
    %vm96 = vcmp.ne.f32.partialorder %v80, %v80
    %vm97 = vcmp.ne.f32.partialorder %v81, %v81
    %vm98 = vcmp.ne.f32.partialorder %v82, %v82
    %vm99 = vcmp.ne.f32.partialorder %v83, %v83
    %vm100 = vcmp.ne.f32.partialorder %v84, %v84
    %vm101 = vcmp.ne.f32.partialorder %v85, %v85
    %vm102 = vcmp.ne.f32.partialorder %v86, %v86
    %vm103 = vcmp.ne.f32.partialorder %v87, %v87
    %vm104 = vcmp.ne.f32.partialorder %v88, %v88
    %vm105 = vcmp.ne.f32.partialorder %v89, %v89
    %vm106 = vcmp.ne.f32.partialorder %v90, %v90
    %vm107 = vcmp.ne.f32.partialorder %v91, %v91
    %vm108 = vcmp.ne.f32.partialorder %v92, %v92
    %v109 = vadd.f32 %v45, 0.0
    %v110 = vadd.f32 %v46, 0.0
    %v111 = vadd.f32 %v47, 0.0
    %v112 = vadd.f32 %v48, 0.0
    %v113 = vadd.f32 %v49, 0.0
    %v114 = vadd.f32 %v50, 0.0
    %v115 = vadd.f32 %v51, 0.0
    %v116 = vadd.f32 %v52, 0.0
    %v117 = vadd.f32 %v53, 0.0
    %v118 = vadd.f32 %v54, 0.0
    %v119 = vadd.f32 %v55, 0.0
    %v120 = vadd.f32 %v56, 0.0
    %v121 = vadd.f32 %v57, 0.0
    %v122 = vadd.f32 %v58, 0.0
    %v123 = vadd.f32 %v59, 0.0
    %v124 = vadd.f32 %v60, 0.0
    %v125 = vand.u32 2147483647, %v77
    %v126 = vand.u32 2147483647, %v78
    %v127 = vand.u32 2147483647, %v79
    %v128 = vand.u32 2147483647, %v80
    %v129 = vand.u32 2147483647, %v81
    %v130 = vand.u32 2147483647, %v82
    %v131 = vand.u32 2147483647, %v83
    %v132 = vand.u32 2147483647, %v84
    %v133 = vand.u32 2147483647, %v85
    %v134 = vand.u32 2147483647, %v86
    %v135 = vand.u32 2147483647, %v87
    %v136 = vand.u32 2147483647, %v88
    %v137 = vand.u32 2147483647, %v89
    %v138 = vand.u32 2147483647, %v90
    %v139 = vand.u32 2147483647, %v91
    %v140 = vand.u32 2147483647, %v92
    %v141 = vsub.f32 0.0, %v125
    %v142 = vsub.f32 0.0, %v126
    %v143 = vsub.f32 0.0, %v127
    %v144 = vsub.f32 0.0, %v128
    %v145 = vsub.f32 0.0, %v129
    %v146 = vsub.f32 0.0, %v130
    %v147 = vsub.f32 0.0, %v131
    %v148 = vsub.f32 0.0, %v132
    %v149 = vsub.f32 0.0, %v133
    %v150 = vsub.f32 0.0, %v134
    %v151 = vsub.f32 0.0, %v135
    %v152 = vsub.f32 0.0, %v136
    %v153 = vsub.f32 0.0, %v137
    %v154 = vsub.f32 0.0, %v138
    %v155 = vsub.f32 0.0, %v139
    %v156 = vsub.f32 0.0, %v140
    %v157 = vmul.f32 %v141, 1.442695
    %v158 = vpow.pop %v157
    %v159 = vmul.f32 %v142, 1.442695
    %v160 = vpow.pop %v159
    %v161 = vmul.f32 %v143, 1.442695
    %v162 = vpow.pop %v161
    %v163 = vmul.f32 %v144, 1.442695
    %v164 = vpow.pop %v163
    %v165 = vmul.f32 %v145, 1.442695
    %v166 = vpow.pop %v165
    %v167 = vmul.f32 %v146, 1.442695
    %v168 = vpow.pop %v167
    %v169 = vmul.f32 %v147, 1.442695
    %v170 = vpow.pop %v169
    %v171 = vmul.f32 %v148, 1.442695
    %v172 = vpow.pop %v171
    %v173 = vmul.f32 %v149, 1.442695
    %v174 = vpow.pop %v173
    %v175 = vmul.f32 %v150, 1.442695
    %v176 = vpow.pop %v175
    %v177 = vmul.f32 %v151, 1.442695
    %v178 = vpow.pop %v177
    %v179 = vmul.f32 %v152, 1.442695
    %v180 = vpow.pop %v179
    %v181 = vmul.f32 %v153, 1.442695
    %v182 = vpow.pop %v181
    %v183 = vmul.f32 %v154, 1.442695
    %v184 = vpow.pop %v183
    %v185 = vmul.f32 %v155, 1.442695
    %v186 = vpow.pop %v185
    %v187 = vmul.f32 %v156, 1.442695
    %v188 = vpow.pop %v187
    %v189 = vadd.f32 %v158, 1.0
    %v190 = vlog2.pop %v189
    %v191 = vmul.f32 %v190, 0.6931472
    %v192 = vmul.f32 -0.5, %v158
    %v193 = vadd.f32 %v192, 1.0
    %v194 = vmul.f32 %v193, %v158
    %v195 = vand.u32 2147483647, %v158
    %vm196 = vcmp.lt.f32.partialorder %v195, 0.0004427343
    %v197 = vsel %vm196, %v194, %v191
    %v198 = vadd.f32 %v160, 1.0
    %v199 = vlog2.pop %v198
    %v200 = vmul.f32 %v199, 0.6931472
    %v201 = vmul.f32 -0.5, %v160
    %v202 = vadd.f32 %v201, 1.0
    %v203 = vmul.f32 %v202, %v160
    %v204 = vand.u32 2147483647, %v160
    %vm205 = vcmp.lt.f32.partialorder %v204, 0.0004427343
    %v206 = vsel %vm205, %v203, %v200
    %v207 = vadd.f32 %v162, 1.0
    %v208 = vlog2.pop %v207
    %v209 = vmul.f32 %v208, 0.6931472
    %v210 = vmul.f32 -0.5, %v162
    %v211 = vadd.f32 %v210, 1.0
    %v212 = vmul.f32 %v211, %v162
    %v213 = vand.u32 2147483647, %v162
    %vm214 = vcmp.lt.f32.partialorder %v213, 0.0004427343
    %v215 = vsel %vm214, %v212, %v209
    %v216 = vadd.f32 %v164, 1.0
    %v217 = vlog2.pop %v216
    %v218 = vmul.f32 %v217, 0.6931472
    %v219 = vmul.f32 -0.5, %v164
    %v220 = vadd.f32 %v219, 1.0
    %v221 = vmul.f32 %v220, %v164
    %v222 = vand.u32 2147483647, %v164
    %vm223 = vcmp.lt.f32.partialorder %v222, 0.0004427343
    %v224 = vsel %vm223, %v221, %v218
    %v225 = vadd.f32 %v166, 1.0
    %v226 = vlog2.pop %v225
    %v227 = vmul.f32 %v226, 0.6931472
    %v228 = vmul.f32 -0.5, %v166
    %v229 = vadd.f32 %v228, 1.0
    %v230 = vmul.f32 %v229, %v166
    %v231 = vand.u32 2147483647, %v166
    %vm232 = vcmp.lt.f32.partialorder %v231, 0.0004427343
    %v233 = vsel %vm232, %v230, %v227
    %v234 = vadd.f32 %v168, 1.0
    %v235 = vlog2.pop %v234
    %v236 = vmul.f32 %v235, 0.6931472
    %v237 = vmul.f32 -0.5, %v168
    %v238 = vadd.f32 %v237, 1.0
    %v239 = vmul.f32 %v238, %v168
    %v240 = vand.u32 2147483647, %v168
    %vm241 = vcmp.lt.f32.partialorder %v240, 0.0004427343
    %v242 = vsel %vm241, %v239, %v236
    %v243 = vadd.f32 %v170, 1.0
    %v244 = vlog2.pop %v243
    %v245 = vmul.f32 %v244, 0.6931472
    %v246 = vmul.f32 -0.5, %v170
    %v247 = vadd.f32 %v246, 1.0
    %v248 = vmul.f32 %v247, %v170
    %v249 = vand.u32 2147483647, %v170
    %vm250 = vcmp.lt.f32.partialorder %v249, 0.0004427343
    %v251 = vsel %vm250, %v248, %v245
    %v252 = vadd.f32 %v172, 1.0
    %v253 = vlog2.pop %v252
    %v254 = vmul.f32 %v253, 0.6931472
    %v255 = vmul.f32 -0.5, %v172
    %v256 = vadd.f32 %v255, 1.0
    %v257 = vmul.f32 %v256, %v172
    %v258 = vand.u32 2147483647, %v172
    %vm259 = vcmp.lt.f32.partialorder %v258, 0.0004427343
    %v260 = vsel %vm259, %v257, %v254
    %v261 = vadd.f32 %v174, 1.0
    %v262 = vlog2.pop %v261
    %v263 = vmul.f32 %v262, 0.6931472
    %v264 = vmul.f32 -0.5, %v174
    %v265 = vadd.f32 %v264, 1.0
    %v266 = vmul.f32 %v265, %v174
    %v267 = vand.u32 2147483647, %v174
    %vm268 = vcmp.lt.f32.partialorder %v267, 0.0004427343
    %v269 = vsel %vm268, %v266, %v263
    %v270 = vadd.f32 %v176, 1.0
    %v271 = vlog2.pop %v270
    %v272 = vmul.f32 %v271, 0.6931472
    %v273 = vmul.f32 -0.5, %v176
    %v274 = vadd.f32 %v273, 1.0
    %v275 = vmul.f32 %v274, %v176
    %v276 = vand.u32 2147483647, %v176
    %vm277 = vcmp.lt.f32.partialorder %v276, 0.0004427343
    %v278 = vsel %vm277, %v275, %v272
    %v279 = vadd.f32 %v178, 1.0
    %v280 = vlog2.pop %v279
    %v281 = vmul.f32 %v280, 0.6931472
    %v282 = vmul.f32 -0.5, %v178
    %v283 = vadd.f32 %v282, 1.0
    %v284 = vmul.f32 %v283, %v178
    %v285 = vand.u32 2147483647, %v178
    %vm286 = vcmp.lt.f32.partialorder %v285, 0.0004427343
    %v287 = vsel %vm286, %v284, %v281
    %v288 = vadd.f32 %v180, 1.0
    %v289 = vlog2.pop %v288
    %v290 = vmul.f32 %v289, 0.6931472
    %v291 = vmul.f32 -0.5, %v180
    %v292 = vadd.f32 %v291, 1.0
    %v293 = vmul.f32 %v292, %v180
    %v294 = vand.u32 2147483647, %v180
    %vm295 = vcmp.lt.f32.partialorder %v294, 0.0004427343
    %v296 = vsel %vm295, %v293, %v290
    %v297 = vadd.f32 %v182, 1.0
    %v298 = vlog2.pop %v297
    %v299 = vmul.f32 %v298, 0.6931472
    %v300 = vmul.f32 -0.5, %v182
    %v301 = vadd.f32 %v300, 1.0
    %v302 = vmul.f32 %v301, %v182
    %v303 = vand.u32 2147483647, %v182
    %vm304 = vcmp.lt.f32.partialorder %v303, 0.0004427343
    %v305 = vsel %vm304, %v302, %v299
    %v306 = vadd.f32 %v184, 1.0
    %v307 = vlog2.pop %v306
    %v308 = vmul.f32 %v307, 0.6931472
    %v309 = vmul.f32 -0.5, %v184
    %v310 = vadd.f32 %v309, 1.0
    %v311 = vmul.f32 %v310, %v184
    %v312 = vand.u32 2147483647, %v184
    %vm313 = vcmp.lt.f32.partialorder %v312, 0.0004427343
    %v314 = vsel %vm313, %v311, %v308
    %v315 = vadd.f32 %v186, 1.0
    %v316 = vlog2.pop %v315
    %v317 = vmul.f32 %v316, 0.6931472
    %v318 = vmul.f32 -0.5, %v186
    %v319 = vadd.f32 %v318, 1.0
    %v320 = vmul.f32 %v319, %v186
    %v321 = vand.u32 2147483647, %v186
    %vm322 = vcmp.lt.f32.partialorder %v321, 0.0004427343
    %v323 = vsel %vm322, %v320, %v317
    %v324 = vadd.f32 %v188, 1.0
    %v325 = vlog2.pop %v324
    %v326 = vmul.f32 %v325, 0.6931472
    %v327 = vmul.f32 -0.5, %v188
    %v328 = vadd.f32 %v327, 1.0
    %v329 = vmul.f32 %v328, %v188
    %v330 = vand.u32 2147483647, %v188
    %vm331 = vcmp.lt.f32.partialorder %v330, 0.0004427343
    %v332 = vsel %vm331, %v329, %v326
    %v333 = vadd.f32 %v61, %v197
    %v334 = vadd.f32 %v62, %v206
    %v335 = vadd.f32 %v63, %v215
    %v336 = vadd.f32 %v64, %v224
    %v337 = vadd.f32 %v65, %v233
    %v338 = vadd.f32 %v66, %v242
    %v339 = vadd.f32 %v67, %v251
    %v340 = vadd.f32 %v68, %v260
    %v341 = vadd.f32 %v69, %v269
    %v342 = vadd.f32 %v70, %v278
    %v343 = vadd.f32 %v71, %v287
    %v344 = vadd.f32 %v72, %v296
    %v345 = vadd.f32 %v73, %v305
    %v346 = vadd.f32 %v74, %v314
    %v347 = vadd.f32 %v75, %v323
    %v348 = vadd.f32 %v76, %v332
    %v349 = vsel %vm93, %v109, %v333
    %v350 = vsel %vm94, %v110, %v334
    %v351 = vsel %vm95, %v111, %v335
    %v352 = vsel %vm96, %v112, %v336
    %v353 = vsel %vm97, %v113, %v337
    %v354 = vsel %vm98, %v114, %v338
    %v355 = vsel %vm99, %v115, %v339
    %v356 = vsel %vm100, %v116, %v340
    %v357 = vsel %vm101, %v117, %v341
    %v358 = vsel %vm102, %v118, %v342
    %v359 = vsel %vm103, %v119, %v343
    %v360 = vsel %vm104, %v120, %v344
    %v361 = vsel %vm105, %v121, %v345
    %v362 = vsel %vm106, %v122, %v346
    %v363 = vsel %vm107, %v123, %v347
    %v364 = vsel %vm108, %v124, %v348
    %365 = vmatprep.subr.mxu0 0.0
    %366 = vmatpush1.xpose.msra.mxu0 %v364
    %367 = vmatprep.subr.mxu0 0.0
    %368 = vmatpush1.xpose.msra.mxu0 %v363
    %369 = vmatprep.subr.mxu0 0.0
    %370 = vmatpush1.xpose.msra.mxu0 %v362
    %371 = vmatprep.subr.mxu0 0.0
    %372 = vmatpush1.xpose.msra.mxu0 %v361
    %373 = vmatprep.subr.mxu0 0.0
    %374 = vmatpush1.xpose.msra.mxu0 %v360
    %375 = vmatprep.subr.mxu0 0.0
    %376 = vmatpush1.xpose.msra.mxu0 %v359
    %377 = vmatprep.subr.mxu0 0.0
    %378 = vmatpush1.xpose.msra.mxu0 %v358
    %379 = vmatprep.subr.mxu0 0.0
    %380 = vmatpush1.xpose.msra.mxu0 %v357
    %381 = vmatprep.subr.mxu0 0.0
    %382 = vmatpush1.xpose.msra.mxu0 %v356
    %383 = vmatprep.subr.mxu0 0.0
    %384 = vmatpush1.xpose.msra.mxu0 %v355
    %385 = vmatprep.subr.mxu0 0.0
    %386 = vmatpush1.xpose.msra.mxu0 %v354
    %387 = vmatprep.subr.mxu0 0.0
    %388 = vmatpush1.xpose.msra.mxu0 %v353
    %389 = vmatprep.subr.mxu0 0.0
    %390 = vmatpush1.xpose.msra.mxu0 %v352
    %391 = vmatprep.subr.mxu0 0.0
    %392 = vmatpush1.xpose.msra.mxu0 %v351
    %393 = vmatprep.subr.mxu0 0.0
    %394 = vmatpush1.xpose.msra.mxu0 %v350
    %395 = vmatprep.subr.mxu0 0.0
    %396 = vmatpush1.xpose.msra.mxu0 %v349
    %397 = vmatprep.subr.mxu0 0.0
    %398 = vmatpush2.xpose.msra.mxu0 0.0
    %399 = vmatprep.subr.mxu0 0.0
    %400 = vmatpush2.xpose.msra.mxu0 0.0
    %401 = vmatprep.subr.mxu0 0.0
    %402 = vmatpush2.xpose.msra.mxu0 0.0
    %403 = vmatprep.subr.mxu0 0.0
    %404 = vmatpush2.xpose.msra.mxu0 0.0
    %405 = vmatprep.subr.mxu0 0.0
    %406 = vmatpush2.xpose.msra.mxu0 0.0
    %407 = vmatprep.subr.mxu0 0.0
    %408 = vmatpush2.xpose.msra.mxu0 0.0
    %409 = vmatprep.subr.mxu0 0.0
    %410 = vmatpush2.xpose.msra.mxu0 0.0
    %411 = vmatprep.subr.mxu0 0.0
    %412 = vmatpush2.xpose.msra.mxu0 0.0
    %413 = vmatprep.subr.mxu0 0.0
    %414 = vmatpush2.xpose.msra.mxu0 0.0
    %415 = vmatprep.subr.mxu0 0.0
    %416 = vmatpush2.xpose.msra.mxu0 0.0
    %417 = vmatprep.subr.mxu0 0.0
    %418 = vmatpush2.xpose.msra.mxu0 0.0
    %419 = vmatprep.subr.mxu0 0.0
    %420 = vmatpush2.xpose.msra.mxu0 0.0
    %421 = vmatprep.subr.mxu0 0.0
    %422 = vmatpush2.xpose.msra.mxu0 0.0
    %423 = vmatprep.subr.mxu0 0.0
    %424 = vmatpush2.xpose.msra.mxu0 0.0
    %425 = vmatprep.subr.mxu0 0.0
    %426 = vmatpush2.xpose.msra.mxu0 0.0
    %427 = vmatprep.subr.mxu0 0.0
    %428 = vmatpush2.xpose.msra.mxu0 0.0
    %429 = vmatprep.mubr.f32.mxu0 0.0
    %430 = vmatmul.mubr.f32.gmra.mxu0 %v44
    %v431 = vpop.f32.mrf.mxu0
    %v432 = vadd.f32 0.0, %v431
    %v433 = vpop.f32.mrf.mxu0
    %434 = vdwg.mxu0
    %v435 = vadd.f32 %v43, %v432
    %436 = vst [vmem:[#allocation7] sm:$0xff] %v435
    // Predicated region
    $region22: #{tpu_custom_call.1} parent=1 // pred_check
      _
    $region23: #{tpu_custom_call.1} parent=1 // pred_check_branch
      %438 = sbr.rel (0) target = $region25
    $region24: #{tpu_custom_call.1} parent=1 // pred_region
      %s440 = ssub.s32 128, 128
      %441 = vsyncadd [#allocation4], %s440
      %s443 = sshll.u32 [#allocation7], 4
      %s444 = int_to_ptr.vmem [resolvable:$true] %s443
      %446 = dma.vmem_to_hbm [thread:$0]  %s444, 128, %s2, [#allocation4]
    $region25: #{tpu_custom_call.1} parent=1 // pred_fallthru
      _
    // Predicated region
    $region26: #{tpu_custom_call.1} parent=1 // pred_check
      _
    $region27: #{tpu_custom_call.1} parent=1 // pred_check_branch
      %448 = sbr.rel (0) target = $region29
    $region28: #{tpu_custom_call.1} parent=1 // pred_region
      %449 = dma.done [#allocation4], 128
    $region29: #{tpu_custom_call.1} parent=1 // pred_fallthru
      _
    %450 = vsyncpa [#allocation3], 1
    %451 = vsyncpa [#allocation6], 1
    %452 = vsyncpa [#allocation4], 1

</llo_original>
